<compile_context>
chip_gen: v7x
topology: tpu7x:2x2x1
jax: 0.10.0
libtpu: 0.0.40
codegen_flags: <defaults>
</compile_context>

<pallas_src>
import functools

import jax
import jax.numpy as jnp
from jax.experimental import pallas as pl
from jax.experimental.pallas import tpu as pltpu


def _round_up(n, m):
    return ((n + m - 1) // m) * m


def clip_adapter_kernel(img_ref, gamma_ref, beta_ref, w1_ref, w2_ref,
                        text_ref, out_ref, xn_ref,
                        *, ratio, logit_scale, eps):
    # ---- image branch: computed once, cached in VMEM scratch --------------
    @pl.when(pl.program_id(0) == 0)
    def _():
        x = img_ref[...].astype(jnp.float32)                       # [B, D]

        # BatchNorm1d (training-mode batch stats), fused into scale/shift:
        #   scale = gamma * rsqrt(var + eps); shift = beta - mean * scale
        mean = jnp.mean(x, axis=0, keepdims=True)                  # [1, D]
        var = jnp.mean(x * x, axis=0, keepdims=True) - mean * mean # biased
        scale = gamma_ref[...] * jax.lax.rsqrt(var + eps)
        shift = beta_ref[...] - mean * scale
        x = x * scale + shift                                      # one FMA/elem

        # adapter: relu(x @ W1) -> relu(. @ W2); bf16 MXU operands, f32 acc.
        a = jnp.dot(x.astype(jnp.bfloat16), w1_ref[...],
                    preferred_element_type=jnp.float32)            # [B, H]
        a = jnp.maximum(a, 0.0)
        a = jnp.dot(a.astype(jnp.bfloat16), w2_ref[...],
                    preferred_element_type=jnp.float32)            # [B, D]
        a = jnp.maximum(a, 0.0)

        # residual mix + L2-normalize; logit_scale folded into the norm so
        # the post-matmul scale (O(B*T)) disappears.  Tiny eps guards a
        # degenerate all-zero row (torch would produce NaN there).
        x = x * (1.0 - ratio) + a * ratio
        inv_norm = jax.lax.rsqrt(
            jnp.sum(x * x, axis=-1, keepdims=True) + 1e-30)
        xn_ref[...] = (x * (logit_scale * inv_norm)).astype(jnp.bfloat16)

    # ---- per-text-tile logits: [B, D] @ [D, T_tile]  (lane-dense store) ---
    out_ref[...] = jnp.dot(xn_ref[...], text_ref[...],
                           preferred_element_type=jnp.float32)


def clip_adapter_forward(img, text, gamma, beta, w1, w2,
                         *, ratio, logit_scale=100.0, eps=1e-5,
                         max_text_tile=2048):
    """img: [B, 512] f32, text: [T, 512] f32, w1: [512, 128], w2: [128, 512]."""
    B, D = img.shape
    T, Dt = text.shape
    assert D == Dt
    H = w1.shape[1]

    # Lane-dense, MXU-friendly text layout: zero-pad T to a multiple of the
    # tile (itself a multiple of 128), pre-transpose to [D, T_pad], cast bf16.
    t_tile = min(max_text_tile, _round_up(T, 128))
    T_pad = _round_up(T, t_tile)
    text_T = jnp.zeros((D, T_pad), jnp.bfloat16)
    text_T = text_T.at[:, :T].set(text.T.astype(jnp.bfloat16))

    w1_b = w1.astype(jnp.bfloat16)
    w2_b = w2.astype(jnp.bfloat16)

    kernel = functools.partial(
        clip_adapter_kernel,
        ratio=float(ratio), logit_scale=float(logit_scale), eps=float(eps))

    grid = (T_pad // t_tile,)
    out = pl.pallas_call(
        kernel,
        out_shape=jax.ShapeDtypeStruct((B, T_pad), jnp.float32),
        grid_spec=pltpu.PrefetchScalarGridSpec(
            num_scalar_prefetch=0,
            grid=grid,
            in_specs=[
                pl.BlockSpec((B, D), lambda t: (0, 0)),        # img (resident)
                pl.BlockSpec((1, D), lambda t: (0, 0)),        # gamma
                pl.BlockSpec((1, D), lambda t: (0, 0)),        # beta
                pl.BlockSpec((D, H), lambda t: (0, 0)),        # w1 (bf16)
                pl.BlockSpec((H, D), lambda t: (0, 0)),        # w2 (bf16)
                pl.BlockSpec((D, t_tile), lambda t: (0, t)),   # text_T tile
            ],
            out_specs=pl.BlockSpec((B, t_tile), lambda t: (0, t)),
            scratch_shapes=[pltpu.VMEM((B, D), jnp.bfloat16)],  # cached image feats
        ),
        compiler_params=pltpu.CompilerParams(
            # "arbitrary": the image-branch scratch is written at t == 0 and
            # reused by later tiles, so the text axis must stay sequential on
            # one core.  (For v7x megacore one could drop the cache, recompute
            # the cheap image branch per tile, and mark this "parallel".)
            dimension_semantics=("arbitrary",),
            # Text tiles are <= 2 MiB bf16 (x2 double-buffer); 32 MiB is safe
            # headroom on every generation incl. v7x's 64 MiB VMEM.
            vmem_limit_bytes=32 * 1024 * 1024,
        ),
    )(img, gamma, beta, w1_b, w2_b, text_T)

    return out[:, :T]


if __name__ == "__main__":
    key = jax.random.PRNGKey(0)
    k_img, k_text, k_w1, k_w2 = jax.random.split(key, 4)

    B, D, H, T = 8, 512, 128, 16   # batch, feature dim, bottleneck, #texts
    ratio = 0.2

    img = jax.random.normal(k_img, (B, D), dtype=jnp.float32)
    text = jax.random.normal(k_text, (T, D), dtype=jnp.float32)

    # Deterministic parameter init (shapes from the module __init__).
    gamma = jnp.ones((1, D), dtype=jnp.float32)     # BatchNorm1d affine defaults
    beta = jnp.zeros((1, D), dtype=jnp.float32)
    # Linear(512,128,bias=False)/Linear(128,512,bias=False); stored [in, out].
    w1 = (jax.random.uniform(k_w1, (D, H), dtype=jnp.float32,
                             minval=-1.0, maxval=1.0) / jnp.sqrt(D))
    w2 = (jax.random.uniform(k_w2, (H, D), dtype=jnp.float32,
                             minval=-1.0, maxval=1.0) / jnp.sqrt(H))

    logits = clip_adapter_forward(img, text, gamma, beta, w1, w2, ratio=ratio)
    jax.block_until_ready(logits)
    assert logits.shape == (B, T)

    # ---- Reference 1: pure-f32 PyTorch semantics ---------------------------
    x = img
    mean = jnp.mean(x, axis=0, keepdims=True)
    var = jnp.mean((x - mean) ** 2, axis=0, keepdims=True)
    xb = (x - mean) / jnp.sqrt(var + 1e-5) * gamma + beta
    a32 = jnp.maximum(xb @ w1, 0.0)
    a32 = jnp.maximum(a32 @ w2, 0.0)
    xm32 = xb * (1 - ratio) + a32 * ratio
    xn32 = xm32 / jnp.linalg.norm(xm32, axis=-1, keepdims=True)
    ref_f32 = 100.0 * xn32 @ text.T

    # ---- Reference 2: same bf16-operand / f32-accumulate policy as kernel --
    ab = jnp.maximum(jnp.dot(xb.astype(jnp.bfloat16), w1.astype(jnp.bfloat16),
                             preferred_element_type=jnp.float32), 0.0)
    ab = jnp.maximum(jnp.dot(ab.astype(jnp.bfloat16), w2.astype(jnp.bfloat16),
                             preferred_element_type=jnp.float32), 0.0)
    xmb = xb * (1 - ratio) + ab * ratio
    xnb = xmb * jax.lax.rsqrt(jnp.sum(xmb * xmb, axis=-1, keepdims=True))
    ref_bf16 = jnp.dot((100.0 * xnb).astype(jnp.bfloat16),
                       text.T.astype(jnp.bfloat16),
                       preferred_element_type=jnp.float32)

    # Exact-policy match (tight) and f32-semantics match (bf16-rounding slack).
    assert jnp.allclose(logits, ref_bf16, atol=5e-2, rtol=1e-3), (
        float(jnp.max(jnp.abs(logits - ref_bf16))))
    assert jnp.allclose(logits, ref_f32, atol=2.0, rtol=2e-2), (
        float(jnp.max(jnp.abs(logits - ref_f32))))
    print("KERNEL_OK")
</pallas_src>

<mosaic_0001>
module attributes {stable_mosaic.version = 11 : i64} {
  func.func @clip_adapter_kernel(%arg0: i32, %arg1: memref<8x512xf32, #tpu.memory_space<vmem>>, %arg2: memref<1x512xf32, #tpu.memory_space<vmem>>, %arg3: memref<1x512xf32, #tpu.memory_space<vmem>>, %arg4: memref<512x128xbf16, #tpu.memory_space<vmem>>, %arg5: memref<128x512xbf16, #tpu.memory_space<vmem>>, %arg6: memref<512x128xbf16, #tpu.memory_space<vmem>>, %arg7: memref<8x128xf32, #tpu.memory_space<vmem>>, %arg8: memref<8x512xbf16, #tpu.memory_space<vmem>>) attributes {dimension_semantics = [#tpu.dimension_semantics<arbitrary>], iteration_bounds = array<i64: 1>, scalar_prefetch = 0 : i64, scratch_operands = 1 : i64, tpu.core_type = #tpu.core_type<tc>, window_params = [{pipeline_mode = #tpu.pipeline_mode<synchronous>, transform_indices = @transform_0, window_bounds = array<i64: 8, 512>}, {pipeline_mode = #tpu.pipeline_mode<synchronous>, transform_indices = @transform_1, window_bounds = array<i64: 1, 512>}, {pipeline_mode = #tpu.pipeline_mode<synchronous>, transform_indices = @transform_2, window_bounds = array<i64: 1, 512>}, {pipeline_mode = #tpu.pipeline_mode<synchronous>, transform_indices = @transform_3, window_bounds = array<i64: 512, 128>}, {pipeline_mode = #tpu.pipeline_mode<synchronous>, transform_indices = @transform_4, window_bounds = array<i64: 128, 512>}, {transform_indices = @transform_5, window_bounds = array<i64: 512, 128>}, {transform_indices = @transform_6, window_bounds = array<i64: 8, 128>}]} {
    %c0_i32 = arith.constant 0 : i32
    %0 = arith.cmpi eq, %arg0, %c0_i32 : i32
    %1 = arith.extui %0 : i1 to i32
    %c0_i32_0 = arith.constant 0 : i32
    %2 = arith.cmpi ne, %1, %c0_i32_0 : i32
    scf.if %2 {
      %c0_6 = arith.constant 0 : index
      %c0_7 = arith.constant 0 : index
      %7 = vector.load %arg1[%c0_6, %c0_7] : memref<8x512xf32, #tpu.memory_space<vmem>>, vector<8x512xf32>
      %cst_8 = arith.constant dense<0.000000e+00> : vector<512xf32>
      %8 = vector.multi_reduction <add>, %7, %cst_8 [0] : vector<8x512xf32> to vector<512xf32>
      %9 = vector.shape_cast %8 : vector<512xf32> to vector<1x512xf32>
      %cst_9 = arith.constant 8.000000e+00 : f32
      %10 = vector.broadcast %cst_9 : f32 to vector<1x512xf32>
      %11 = arith.divf %9, %10 : vector<1x512xf32>
      %12 = arith.mulf %7, %7 : vector<8x512xf32>
      %cst_10 = arith.constant dense<0.000000e+00> : vector<512xf32>
      %13 = vector.multi_reduction <add>, %12, %cst_10 [0] : vector<8x512xf32> to vector<512xf32>
      %14 = vector.shape_cast %13 : vector<512xf32> to vector<1x512xf32>
      %cst_11 = arith.constant 8.000000e+00 : f32
      %15 = vector.broadcast %cst_11 : f32 to vector<1x512xf32>
      %16 = arith.divf %14, %15 : vector<1x512xf32>
      %17 = arith.mulf %11, %11 : vector<1x512xf32>
      %18 = arith.subf %16, %17 : vector<1x512xf32>
      %c0_12 = arith.constant 0 : index
      %c0_13 = arith.constant 0 : index
      %19 = vector.load %arg2[%c0_12, %c0_13] : memref<1x512xf32, #tpu.memory_space<vmem>>, vector<1x512xf32>
      %cst_14 = arith.constant 9.99999974E-6 : f32
      %20 = vector.broadcast %cst_14 : f32 to vector<1x512xf32>
      %21 = arith.addf %18, %20 : vector<1x512xf32>
      %22 = math.rsqrt %21 : vector<1x512xf32>
      %23 = arith.mulf %19, %22 : vector<1x512xf32>
      %c0_15 = arith.constant 0 : index
      %c0_16 = arith.constant 0 : index
      %24 = vector.load %arg3[%c0_15, %c0_16] : memref<1x512xf32, #tpu.memory_space<vmem>>, vector<1x512xf32>
      %25 = arith.mulf %11, %23 : vector<1x512xf32>
      %26 = arith.subf %24, %25 : vector<1x512xf32>
      %27 = vector.broadcast %23 : vector<1x512xf32> to vector<8x512xf32>
      %28 = arith.mulf %7, %27 : vector<8x512xf32>
      %29 = vector.broadcast %26 : vector<1x512xf32> to vector<8x512xf32>
      %30 = arith.addf %28, %29 : vector<8x512xf32>
      %31 = arith.truncf %30 : vector<8x512xf32> to vector<8x512xbf16>
      %c0_17 = arith.constant 0 : index
      %c0_18 = arith.constant 0 : index
      %32 = vector.load %arg4[%c0_17, %c0_18] : memref<512x128xbf16, #tpu.memory_space<vmem>>, vector<512x128xbf16>
      %cst_19 = arith.constant dense<0.000000e+00> : vector<8x128xf32>
      %33 = tpu.matmul %31, %32, %cst_19 {dimension_numbers = #tpu.dot_dimension_numbers<[1], [0], [0], [1], [0, 0, 1, 1], [], []>} : vector<8x512xbf16>, vector<512x128xbf16>, vector<8x128xf32> -> vector<8x128xf32>
      %cst_20 = arith.constant 0.000000e+00 : f32
      %34 = vector.broadcast %cst_20 : f32 to vector<8x128xf32>
      %35 = arith.maximumf %33, %34 : vector<8x128xf32>
      %36 = arith.truncf %35 : vector<8x128xf32> to vector<8x128xbf16>
      %c0_21 = arith.constant 0 : index
      %c0_22 = arith.constant 0 : index
      %37 = vector.load %arg5[%c0_21, %c0_22] : memref<128x512xbf16, #tpu.memory_space<vmem>>, vector<128x512xbf16>
      %cst_23 = arith.constant dense<0.000000e+00> : vector<8x512xf32>
      %38 = tpu.matmul %36, %37, %cst_23 {dimension_numbers = #tpu.dot_dimension_numbers<[1], [0], [0], [1], [0, 0, 1, 1], [], []>} : vector<8x128xbf16>, vector<128x512xbf16>, vector<8x512xf32> -> vector<8x512xf32>
      %cst_24 = arith.constant 0.000000e+00 : f32
      %39 = vector.broadcast %cst_24 : f32 to vector<8x512xf32>
      %40 = arith.maximumf %38, %39 : vector<8x512xf32>
      %cst_25 = arith.constant 8.000000e-01 : f32
      %41 = vector.broadcast %cst_25 : f32 to vector<8x512xf32>
      %42 = arith.mulf %30, %41 : vector<8x512xf32>
      %cst_26 = arith.constant 2.000000e-01 : f32
      %43 = vector.broadcast %cst_26 : f32 to vector<8x512xf32>
      %44 = arith.mulf %40, %43 : vector<8x512xf32>
      %45 = arith.addf %42, %44 : vector<8x512xf32>
      %46 = arith.mulf %45, %45 : vector<8x512xf32>
      %cst_27 = arith.constant dense<0.000000e+00> : vector<8xf32>
      %47 = vector.multi_reduction <add>, %46, %cst_27 [1] : vector<8x512xf32> to vector<8xf32>
      %48 = vector.shape_cast %47 : vector<8xf32> to vector<8x1xf32>
      %cst_28 = arith.constant 1.000000e-30 : f32
      %49 = vector.broadcast %cst_28 : f32 to vector<8x1xf32>
      %50 = arith.addf %48, %49 : vector<8x1xf32>
      %51 = math.rsqrt %50 : vector<8x1xf32>
      %cst_29 = arith.constant 1.000000e+02 : f32
      %52 = vector.broadcast %cst_29 : f32 to vector<8x1xf32>
      %53 = arith.mulf %52, %51 : vector<8x1xf32>
      %54 = vector.broadcast %53 : vector<8x1xf32> to vector<8x512xf32>
      %55 = arith.mulf %45, %54 : vector<8x512xf32>
      %56 = arith.truncf %55 : vector<8x512xf32> to vector<8x512xbf16>
      %c0_30 = arith.constant 0 : index
      %c0_31 = arith.constant 0 : index
      %57 = vector.load %arg8[%c0_30, %c0_31] : memref<8x512xbf16, #tpu.memory_space<vmem>>, vector<8x512xbf16>
      tpu.vector_store %arg8[%c0_30, %c0_31], %56 {strides = array<i32>} : memref<8x512xbf16, #tpu.memory_space<vmem>>, vector<8x512xbf16>,
    } else {
    }
    %c0 = arith.constant 0 : index
    %c0_1 = arith.constant 0 : index
    %3 = vector.load %arg8[%c0, %c0_1] : memref<8x512xbf16, #tpu.memory_space<vmem>>, vector<8x512xbf16>
    %c0_2 = arith.constant 0 : index
    %c0_3 = arith.constant 0 : index
    %4 = vector.load %arg6[%c0_2, %c0_3] : memref<512x128xbf16, #tpu.memory_space<vmem>>, vector<512x128xbf16>
    %cst = arith.constant dense<0.000000e+00> : vector<8x128xf32>
    %5 = tpu.matmul %3, %4, %cst {dimension_numbers = #tpu.dot_dimension_numbers<[1], [0], [0], [1], [0, 0, 1, 1], [], []>} : vector<8x512xbf16>, vector<512x128xbf16>, vector<8x128xf32> -> vector<8x128xf32>
    %c0_4 = arith.constant 0 : index
    %c0_5 = arith.constant 0 : index
    %6 = vector.load %arg7[%c0_4, %c0_5] : memref<8x128xf32, #tpu.memory_space<vmem>>, vector<8x128xf32>
    tpu.vector_store %arg7[%c0_4, %c0_5], %5 {strides = array<i32>} : memref<8x128xf32, #tpu.memory_space<vmem>>, vector<8x128xf32>,
    return
  }
  func.func @transform_0(%arg0: i32) -> (i32, i32) {
    %c0_i32 = arith.constant 0 : i32
    %c0_i32_0 = arith.constant 0 : i32
    %c0_i32_1 = arith.constant 0 : i32
    return %c0_i32, %c0_i32_0 : i32, i32
  }
  func.func @transform_1(%arg0: i32) -> (i32, i32) {
    %c0_i32 = arith.constant 0 : i32
    %c0_i32_0 = arith.constant 0 : i32
    %c0_i32_1 = arith.constant 0 : i32
    return %c0_i32, %c0_i32_0 : i32, i32
  }
  func.func @transform_2(%arg0: i32) -> (i32, i32) {
    %c0_i32 = arith.constant 0 : i32
    %c0_i32_0 = arith.constant 0 : i32
    %c0_i32_1 = arith.constant 0 : i32
    return %c0_i32, %c0_i32_0 : i32, i32
  }
  func.func @transform_3(%arg0: i32) -> (i32, i32) {
    %c0_i32 = arith.constant 0 : i32
    %c0_i32_0 = arith.constant 0 : i32
    %c0_i32_1 = arith.constant 0 : i32
    return %c0_i32, %c0_i32_0 : i32, i32
  }
  func.func @transform_4(%arg0: i32) -> (i32, i32) {
    %c0_i32 = arith.constant 0 : i32
    %c0_i32_0 = arith.constant 0 : i32
    %c0_i32_1 = arith.constant 0 : i32
    return %c0_i32, %c0_i32_0 : i32, i32
  }
  func.func @transform_5(%arg0: i32) -> (i32, i32) {
    %c0_i32 = arith.constant 0 : i32
    %c0_i32_0 = arith.constant 0 : i32
    return %c0_i32, %arg0 : i32, i32
  }
  func.func @transform_6(%arg0: i32) -> (i32, i32) {
    %c0_i32 = arith.constant 0 : i32
    %c0_i32_0 = arith.constant 0 : i32
    return %c0_i32, %arg0 : i32, i32
  }
}

</mosaic_0001>

<llo_original>
// kernel: tpu_custom_call.1
$region0: #{tpu_custom_call.1}
  #allocation0 [shape = 'u32[]', space=smem, size = 0x4, offset = 0x4, fixed_abs, tag = 'smem constant byte address 0x4 - core index']
  #allocation1 [shape = 'u32[144,128]{1,0:T(1,128)}', space=vmem, size = 0x12000, scoped, tag = 'internal scratch']
  #allocation2 [shape = 'bf16[8,512]{1,0:T(8,128)(2,1)}', space=vmem, size = 0x2000, scoped, tag = 'scratch operand']
  %s0 = inlined_call_operand.hbm [shape: f32[8,512], index: 0, kind: input, shape index: {}]
  %s1 = inlined_call_operand.hbm [shape: f32[1,512], index: 1, kind: input, shape index: {}]
  %s2 = inlined_call_operand.vmem [shape: f32[1,512], index: 2, kind: input, shape index: {}]
  %s3 = inlined_call_operand.hbm [shape: bf16[512,128], index: 3, kind: input, shape index: {}]
  %s4 = inlined_call_operand.hbm [shape: bf16[128,512], index: 4, kind: input, shape index: {}]
  %s5 = inlined_call_operand.hbm [shape: bf16[512,128], index: 5, kind: input, shape index: {}]
  %s6 = inlined_call_operand.hbm [shape: f32[8,128], index: 6, kind: output, shape index: {}]
  %s7 = sld [smem:[#allocation0]]
  $region58: #{tpu_custom_call.1} parent=0
    _
  %s9 = ssub.s32 1, %s7
  %s10 = scalar_select 0, %s9, %s7
  $region1: #{tpu_custom_call.1} parent=0
    #allocation3 [shape = 'u8[16384]{0}', space=vmem, size = 0x4000, scoped, tag = 'input window, operand 0, single buffered']
    #allocation4 [shape = 's32[1]{0}', space=sflag, size = 0x4, scoped, tag = 'scoped memory for tpu_custom_call.1']
    #allocation5 [shape = 's32[1]{0}', space=sflag, size = 0x4, scoped, tag = 'scoped memory for tpu_custom_call.1']
    #allocation6 [shape = 'u8[2048]{0}', space=vmem, size = 0x800, scoped, tag = 'input window, operand 1, single buffered']
    #allocation7 [shape = 's32[1]{0}', space=sflag, size = 0x4, scoped, tag = 'scoped memory for tpu_custom_call.1']
    #allocation8 [shape = 'u8[131072]{0}', space=vmem, size = 0x20000, scoped, tag = 'input window, operand 3, single buffered']
    #allocation9 [shape = 'u8[131072]{0}', space=vmem, size = 0x20000, scoped, tag = 'input window, operand 4, single buffered']
    #allocation10 [shape = 's32[1]{0}', space=sflag, size = 0x4, scoped, tag = 'scoped memory for tpu_custom_call.1']
    #allocation11 [shape = 'u8[131072]{0}', space=vmem, size = 0x20000, scoped, tag = 'input window, operand 5, single buffered']
    #allocation12 [shape = 'u8[4096]{0}', space=vmem, size = 0x1000, scoped, tag = 'output window, operand 0, single buffered']
    %11 = vsyncpa [#allocation4], 0
    %12 = vsyncpa [#allocation7], 0
    %13 = vsyncpa [#allocation10], 0
    %14 = vsyncpa [#allocation5], 0
    // Predicated region
    $region2: #{tpu_custom_call.1} parent=1 // pred_check
      _
    $region3: #{tpu_custom_call.1} parent=1 // pred_check_branch
      %16 = sbr.rel (0) target = $region5
    $region4: #{tpu_custom_call.1} parent=1 // pred_region
      %s18 = ssub.s32 512, 512
      %19 = vsyncadd [#allocation4], %s18
      %s21 = sshll.u32 [#allocation3], 4
      %s22 = int_to_ptr.vmem [resolvable:$true] %s21
      %24 = dma.hbm_to_vmem [thread:$0]  %s0, 512, %s22, [#allocation4]
    $region5: #{tpu_custom_call.1} parent=1 // pred_fallthru
      _
    // Predicated region
    $region6: #{tpu_custom_call.1} parent=1 // pred_check
      _
    $region7: #{tpu_custom_call.1} parent=1 // pred_check_branch
      %26 = sbr.rel (0) target = $region9
    $region8: #{tpu_custom_call.1} parent=1 // pred_region
      %s28 = ssub.s32 64, 64
      %29 = vsyncadd [#allocation7], %s28
      %s31 = sshll.u32 [#allocation6], 4
      %s32 = int_to_ptr.vmem [resolvable:$true] %s31
      %34 = dma.hbm_to_vmem [thread:$0]  %s1, 64, %s32, [#allocation7]
    $region9: #{tpu_custom_call.1} parent=1 // pred_fallthru
      _
    // Predicated region
    $region10: #{tpu_custom_call.1} parent=1 // pred_check
      _
    $region11: #{tpu_custom_call.1} parent=1 // pred_check_branch
      %36 = sbr.rel (0) target = $region13
    $region12: #{tpu_custom_call.1} parent=1 // pred_region
      _
    $region13: #{tpu_custom_call.1} parent=1 // pred_fallthru
      _
    // Predicated region
    $region14: #{tpu_custom_call.1} parent=1 // pred_check
      _
    $region15: #{tpu_custom_call.1} parent=1 // pred_check_branch
      %38 = sbr.rel (0) target = $region17
    $region16: #{tpu_custom_call.1} parent=1 // pred_region
      %s40 = ssub.s32 4096, 4096
      %41 = vsyncadd [#allocation7], %s40
      %s42 = sshll.u32 [#allocation8], 4
      %s43 = int_to_ptr.vmem [resolvable:$true] %s42
      %48 = dma.hbm_to_vmem [thread:$0]  %s3, 4096, %s43, [#allocation7], 64, 64, 4
    $region17: #{tpu_custom_call.1} parent=1 // pred_fallthru
      _
    // Predicated region
    $region18: #{tpu_custom_call.1} parent=1 // pred_check
      _
    $region19: #{tpu_custom_call.1} parent=1 // pred_check_branch
      %50 = sbr.rel (0) target = $region21
    $region20: #{tpu_custom_call.1} parent=1 // pred_region
      %s52 = ssub.s32 4096, 4096
      %53 = vsyncadd [#allocation10], %s52
      %s54 = sshll.u32 [#allocation9], 4
      %s55 = int_to_ptr.vmem [resolvable:$true] %s54
      %60 = dma.hbm_to_vmem [thread:$0]  %s4, 4096, %s55, [#allocation10], 256, 256, 16
    $region21: #{tpu_custom_call.1} parent=1 // pred_fallthru
      _
    // Predicated region
    $region22: #{tpu_custom_call.1} parent=1 // pred_check
      _
    $region23: #{tpu_custom_call.1} parent=1 // pred_check_branch
      %62 = sbr.rel (0) target = $region25
    $region24: #{tpu_custom_call.1} parent=1 // pred_region
      %s64 = ssub.s32 4096, 4096
      %65 = vsyncadd [#allocation10], %s64
      %s66 = sshll.u32 [#allocation11], 4
      %s67 = int_to_ptr.vmem [resolvable:$true] %s66
      %72 = dma.hbm_to_vmem [thread:$0]  %s5, 4096, %s67, [#allocation10], 64, 64, 4
    $region25: #{tpu_custom_call.1} parent=1 // pred_fallthru
      _
    // Predicated region
    $region26: #{tpu_custom_call.1} parent=1 // pred_check
      _
    $region27: #{tpu_custom_call.1} parent=1 // pred_check_branch
      %74 = sbr.rel (0) target = $region29
    $region28: #{tpu_custom_call.1} parent=1 // pred_region
      %75 = dma.done [#allocation4], 512
    $region29: #{tpu_custom_call.1} parent=1 // pred_fallthru
      _
    // Predicated region
    $region30: #{tpu_custom_call.1} parent=1 // pred_check
      _
    $region31: #{tpu_custom_call.1} parent=1 // pred_check_branch
      %77 = sbr.rel (0) target = $region33
    $region32: #{tpu_custom_call.1} parent=1 // pred_region
      %78 = dma.done [#allocation7], 64
    $region33: #{tpu_custom_call.1} parent=1 // pred_fallthru
      _
    // Predicated region
    $region34: #{tpu_custom_call.1} parent=1 // pred_check
      _
    $region35: #{tpu_custom_call.1} parent=1 // pred_check_branch
      %80 = sbr.rel (0) target = $region37
    $region36: #{tpu_custom_call.1} parent=1 // pred_region
      %81 = dma.done [#allocation7], 4096
    $region37: #{tpu_custom_call.1} parent=1 // pred_fallthru
      _
    // Predicated region
    $region38: #{tpu_custom_call.1} parent=1 // pred_check
      _
    $region39: #{tpu_custom_call.1} parent=1 // pred_check_branch
      %83 = sbr.rel (0) target = $region41
    $region40: #{tpu_custom_call.1} parent=1 // pred_region
      %84 = dma.done [#allocation10], 4096
    $region41: #{tpu_custom_call.1} parent=1 // pred_fallthru
      _
    // Predicated region
    $region42: #{tpu_custom_call.1} parent=1 // pred_check
      _
    $region43: #{tpu_custom_call.1} parent=1 // pred_check_branch
      %86 = sbr.rel (0) target = $region45
    $region44: #{tpu_custom_call.1} parent=1 // pred_region
      %87 = dma.done [#allocation10], 4096
    $region45: #{tpu_custom_call.1} parent=1 // pred_fallthru
      _
    %p89 = scmp.eq.s32.totalorder 0, 0
    // Predicated region
    $region46: #{tpu_custom_call.1} parent=1 // pred_check
      %p90 = pneg %p89
    $region47: #{tpu_custom_call.1} parent=1 // pred_check_branch
      %92 = sbr.rel (%p90) target = $region49
    $region48: #{tpu_custom_call.1} parent=1 // pred_region
      %v93 = vld [vmem:[#allocation3] sm:$0xff]
      %v94 = vld [vmem:[#allocation3 + $0x8] sm:$0xff]
      %v95 = vld [vmem:[#allocation3 + $0x10] sm:$0xff]
      %v96 = vld [vmem:[#allocation3 + $0x18] sm:$0xff]
      %v97 = vrot.slane %v93, 4
      %v98 = vadd.f32 %v93, %v97
      %v99 = vrot.slane %v98, 2
      %v100 = vadd.f32 %v98, %v99
      %v101 = vrot.slane %v100, 1
      %v102 = vadd.f32 %v100, %v101
      %v103 = vrot.slane %v94, 4
      %v104 = vadd.f32 %v94, %v103
      %v105 = vrot.slane %v104, 2
      %v106 = vadd.f32 %v104, %v105
      %v107 = vrot.slane %v106, 1
      %v108 = vadd.f32 %v106, %v107
      %v109 = vrot.slane %v95, 4
      %v110 = vadd.f32 %v95, %v109
      %v111 = vrot.slane %v110, 2
      %v112 = vadd.f32 %v110, %v111
      %v113 = vrot.slane %v112, 1
      %v114 = vadd.f32 %v112, %v113
      %v115 = vrot.slane %v96, 4
      %v116 = vadd.f32 %v96, %v115
      %v117 = vrot.slane %v116, 2
      %v118 = vadd.f32 %v116, %v117
      %v119 = vrot.slane %v118, 1
      %v120 = vadd.f32 %v118, %v119
      %v121 = vrcp.pop 8.0
      %v122 = vmul.f32 %v102, %v121
      %v123 = vmul.f32 %v108, %v121
      %v124 = vmul.f32 %v114, %v121
      %v125 = vmul.f32 %v120, %v121
      %v126 = vmul.f32 %v93, %v93
      %v127 = vmul.f32 %v94, %v94
      %v128 = vmul.f32 %v95, %v95
      %v129 = vmul.f32 %v96, %v96
      %v130 = vrot.slane %v126, 4
      %v131 = vadd.f32 %v126, %v130
      %v132 = vrot.slane %v131, 2
      %v133 = vadd.f32 %v131, %v132
      %v134 = vrot.slane %v133, 1
      %v135 = vadd.f32 %v133, %v134
      %v136 = vrot.slane %v127, 4
      %v137 = vadd.f32 %v127, %v136
      %v138 = vrot.slane %v137, 2
      %v139 = vadd.f32 %v137, %v138
      %v140 = vrot.slane %v139, 1
      %v141 = vadd.f32 %v139, %v140
      %v142 = vrot.slane %v128, 4
      %v143 = vadd.f32 %v128, %v142
      %v144 = vrot.slane %v143, 2
      %v145 = vadd.f32 %v143, %v144
      %v146 = vrot.slane %v145, 1
      %v147 = vadd.f32 %v145, %v146
      %v148 = vrot.slane %v129, 4
      %v149 = vadd.f32 %v129, %v148
      %v150 = vrot.slane %v149, 2
      %v151 = vadd.f32 %v149, %v150
      %v152 = vrot.slane %v151, 1
      %v153 = vadd.f32 %v151, %v152
      %v154 = vmul.f32 %v135, %v121
      %v155 = vmul.f32 %v141, %v121
      %v156 = vmul.f32 %v147, %v121
      %v157 = vmul.f32 %v153, %v121
      %v158 = vmul.f32 %v122, %v122
      %v159 = vmul.f32 %v123, %v123
      %v160 = vmul.f32 %v124, %v124
      %v161 = vmul.f32 %v125, %v125
      %v162 = vsub.f32 %v154, %v158
      %v163 = vsub.f32 %v155, %v159
      %v164 = vsub.f32 %v156, %v160
      %v165 = vsub.f32 %v157, %v161
      %v166 = vld [vmem:[#allocation6] sm:$0xf]
      %v167 = vadd.f32 %v162, 1e-05
      %v168 = vadd.f32 %v163, 1e-05
      %v169 = vadd.f32 %v164, 1e-05
      %v170 = vadd.f32 %v165, 1e-05
      %v171 = vrsqrt.pop %v167
      %v172 = vrsqrt.pop %v168
      %v173 = vrsqrt.pop %v169
      %v174 = vrsqrt.pop %v170
      %v179 = vcombine.low %v171, %v172
      %v180 = vcombine.low %v173, %v174
      %v182 = vunpack.c.l.s4 1966171168
      %v183 = vunpack.c.0.s8 %v182
      %v184 = vlaneseq
      %v185 = vshrl.u32 %v184, 7
      %v186 = vsub.s32 %v183, %v185
      %v187 = vrot.slane %v179, %v186
      %v189 = vunpack.c.l.s4 1966171168
      %v190 = vunpack.c.0.s8 %v189
      %v191 = vlaneseq
      %v192 = vshrl.u32 %v191, 7
      %v193 = vsub.s32 %v190, %v192
      %v194 = vrot.slane %v180, %v193
      %v195 = vcombine.low %v187, %v194
      %v197 = vunpack.c.l.s4 1966171168
      %v198 = vunpack.c.0.s8 %v197
      %v199 = vlaneseq
      %v200 = vshrl.u32 %v199, 7
      %v201 = vsub.s32 %v198, %v200
      %v202 = vrot.slane %v195, %v201
      %v204 = vmul.f32 %v166, %v202
      %v205 = vld [vmem:[%s2] sm:$0xf]
      %v207 = vlaneseq
      %v208 = vshrl.u32 %v207, 7
      %v209 = vsub.s32 0, %v208
      %v210 = vrot.slane %v204, %v209
      %v211 = vlaneseq
      %v212 = vshrl.u32 %v211, 7
      %v213 = vsub.s32 1, %v212
      %v214 = vrot.slane %v204, %v213
      %v215 = vlaneseq
      %v216 = vshrl.u32 %v215, 7
      %v217 = vsub.s32 2, %v216
      %v218 = vrot.slane %v204, %v217
      %v219 = vlaneseq
      %v220 = vshrl.u32 %v219, 7
      %v221 = vsub.s32 3, %v220
      %v222 = vrot.slane %v204, %v221
      %v227 = vmul.f32 %v122, %v210
      %v228 = vmul.f32 %v123, %v214
      %v229 = vmul.f32 %v124, %v218
      %v230 = vmul.f32 %v125, %v222
      %v235 = vcombine.low %v227, %v228
      %v236 = vcombine.low %v229, %v230
      %v238 = vunpack.c.l.s4 1966171168
      %v239 = vunpack.c.0.s8 %v238
      %v240 = vlaneseq
      %v241 = vshrl.u32 %v240, 7
      %v242 = vsub.s32 %v239, %v241
      %v243 = vrot.slane %v235, %v242
      %v245 = vunpack.c.l.s4 1966171168
      %v246 = vunpack.c.0.s8 %v245
      %v247 = vlaneseq
      %v248 = vshrl.u32 %v247, 7
      %v249 = vsub.s32 %v246, %v248
      %v250 = vrot.slane %v236, %v249
      %v251 = vcombine.low %v243, %v250
      %v253 = vunpack.c.l.s4 1966171168
      %v254 = vunpack.c.0.s8 %v253
      %v255 = vlaneseq
      %v256 = vshrl.u32 %v255, 7
      %v257 = vsub.s32 %v254, %v256
      %v258 = vrot.slane %v251, %v257
      %v260 = vsub.f32 %v205, %v258
      %v261 = vmul.f32 %v93, %v210
      %v262 = vmul.f32 %v94, %v214
      %v263 = vmul.f32 %v95, %v218
      %v264 = vmul.f32 %v96, %v222
      %v266 = vlaneseq
      %v267 = vshrl.u32 %v266, 7
      %v268 = vsub.s32 0, %v267
      %v269 = vrot.slane %v260, %v268
      %v270 = vlaneseq
      %v271 = vshrl.u32 %v270, 7
      %v272 = vsub.s32 1, %v271
      %v273 = vrot.slane %v260, %v272
      %v274 = vlaneseq
      %v275 = vshrl.u32 %v274, 7
      %v276 = vsub.s32 2, %v275
      %v277 = vrot.slane %v260, %v276
      %v278 = vlaneseq
      %v279 = vshrl.u32 %v278, 7
      %v280 = vsub.s32 3, %v279
      %v281 = vrot.slane %v260, %v280
      %v286 = vadd.f32 %v261, %v269
      %v287 = vadd.f32 %v262, %v273
      %v288 = vadd.f32 %v263, %v277
      %v289 = vadd.f32 %v264, %v281
      %v290 = vpack.c.bf16 %v286, %v286
      %v291 = vpack.c.bf16 %v287, %v287
      %v292 = vpack.c.bf16 %v288, %v288
      %v293 = vpack.c.bf16 %v289, %v289
      %v294 = vld [vmem:[#allocation8] sm:$0xf]
      %v295 = vld [vmem:[#allocation8 + $0x4] sm:$0xf]
      %v296 = vld [vmem:[#allocation8 + $0x8] sm:$0xf]
      %v297 = vld [vmem:[#allocation8 + $0xc] sm:$0xf]
      %v298 = vld [vmem:[#allocation8 + $0x10] sm:$0xf]
      %v299 = vld [vmem:[#allocation8 + $0x14] sm:$0xf]
      %v300 = vld [vmem:[#allocation8 + $0x18] sm:$0xf]
      %v301 = vld [vmem:[#allocation8 + $0x1c] sm:$0xf]
      %v302 = vld [vmem:[#allocation8 + $0x20] sm:$0xf]
      %v303 = vld [vmem:[#allocation8 + $0x24] sm:$0xf]
      %v304 = vld [vmem:[#allocation8 + $0x28] sm:$0xf]
      %v305 = vld [vmem:[#allocation8 + $0x2c] sm:$0xf]
      %v306 = vld [vmem:[#allocation8 + $0x30] sm:$0xf]
      %v307 = vld [vmem:[#allocation8 + $0x34] sm:$0xf]
      %v308 = vld [vmem:[#allocation8 + $0x38] sm:$0xf]
      %v309 = vld [vmem:[#allocation8 + $0x3c] sm:$0xf]
      %v310 = vld [vmem:[#allocation8 + $0x40] sm:$0xf]
      %v311 = vld [vmem:[#allocation8 + $0x44] sm:$0xf]
      %v312 = vld [vmem:[#allocation8 + $0x48] sm:$0xf]
      %v313 = vld [vmem:[#allocation8 + $0x4c] sm:$0xf]
      %v314 = vld [vmem:[#allocation8 + $0x50] sm:$0xf]
      %v315 = vld [vmem:[#allocation8 + $0x54] sm:$0xf]
      %v316 = vld [vmem:[#allocation8 + $0x58] sm:$0xf]
      %v317 = vld [vmem:[#allocation8 + $0x5c] sm:$0xf]
      %v318 = vld [vmem:[#allocation8 + $0x60] sm:$0xf]
      %v319 = vld [vmem:[#allocation8 + $0x64] sm:$0xf]
      %v320 = vld [vmem:[#allocation8 + $0x68] sm:$0xf]
      %v321 = vld [vmem:[#allocation8 + $0x6c] sm:$0xf]
      %v322 = vld [vmem:[#allocation8 + $0x70] sm:$0xf]
      %v323 = vld [vmem:[#allocation8 + $0x74] sm:$0xf]
      %v324 = vld [vmem:[#allocation8 + $0x78] sm:$0xf]
      %v325 = vld [vmem:[#allocation8 + $0x7c] sm:$0xf]
      %v326 = vld [vmem:[#allocation8 + $0x80] sm:$0xf]
      %v327 = vld [vmem:[#allocation8 + $0x84] sm:$0xf]
      %v328 = vld [vmem:[#allocation8 + $0x88] sm:$0xf]
      %v329 = vld [vmem:[#allocation8 + $0x8c] sm:$0xf]
      %v330 = vld [vmem:[#allocation8 + $0x90] sm:$0xf]
      %v331 = vld [vmem:[#allocation8 + $0x94] sm:$0xf]
      %v332 = vld [vmem:[#allocation8 + $0x98] sm:$0xf]
      %v333 = vld [vmem:[#allocation8 + $0x9c] sm:$0xf]
      %v334 = vld [vmem:[#allocation8 + $0xa0] sm:$0xf]
      %v335 = vld [vmem:[#allocation8 + $0xa4] sm:$0xf]
      %v336 = vld [vmem:[#allocation8 + $0xa8] sm:$0xf]
      %v337 = vld [vmem:[#allocation8 + $0xac] sm:$0xf]
      %v338 = vld [vmem:[#allocation8 + $0xb0] sm:$0xf]
      %v339 = vld [vmem:[#allocation8 + $0xb4] sm:$0xf]
      %v340 = vld [vmem:[#allocation8 + $0xb8] sm:$0xf]
      %v341 = vld [vmem:[#allocation8 + $0xbc] sm:$0xf]
      %v342 = vld [vmem:[#allocation8 + $0xc0] sm:$0xf]
      %v343 = vld [vmem:[#allocation8 + $0xc4] sm:$0xf]
      %v344 = vld [vmem:[#allocation8 + $0xc8] sm:$0xf]
      %v345 = vld [vmem:[#allocation8 + $0xcc] sm:$0xf]
      %v346 = vld [vmem:[#allocation8 + $0xd0] sm:$0xf]
      %v347 = vld [vmem:[#allocation8 + $0xd4] sm:$0xf]
      %v348 = vld [vmem:[#allocation8 + $0xd8] sm:$0xf]
      %v349 = vld [vmem:[#allocation8 + $0xdc] sm:$0xf]
      %v350 = vld [vmem:[#allocation8 + $0xe0] sm:$0xf]
      %v351 = vld [vmem:[#allocation8 + $0xe4] sm:$0xf]
      %v352 = vld [vmem:[#allocation8 + $0xe8] sm:$0xf]
      %v353 = vld [vmem:[#allocation8 + $0xec] sm:$0xf]
      %v354 = vld [vmem:[#allocation8 + $0xf0] sm:$0xf]
      %v355 = vld [vmem:[#allocation8 + $0xf4] sm:$0xf]
      %v356 = vld [vmem:[#allocation8 + $0xf8] sm:$0xf]
      %v357 = vld [vmem:[#allocation8 + $0xfc] sm:$0xf]
      %v422 = vunpack.c.l.b16 %v294
      %v423 = vunpack.c.l.b16 %v295
      %v424 = vunpack.c.l.b16 %v296
      %v425 = vunpack.c.l.b16 %v297
      %v426 = vunpack.c.l.b16 %v298
      %v427 = vunpack.c.l.b16 %v299
      %v428 = vunpack.c.l.b16 %v300
      %v429 = vunpack.c.l.b16 %v301
      %v430 = vunpack.c.l.b16 %v302
      %v431 = vunpack.c.l.b16 %v303
      %v432 = vunpack.c.l.b16 %v304
      %v433 = vunpack.c.l.b16 %v305
      %v434 = vunpack.c.l.b16 %v306
      %v435 = vunpack.c.l.b16 %v307
      %v436 = vunpack.c.l.b16 %v308
      %v437 = vunpack.c.l.b16 %v309
      %v438 = vunpack.c.l.b16 %v310
      %v439 = vunpack.c.l.b16 %v311
      %v440 = vunpack.c.l.b16 %v312
      %v441 = vunpack.c.l.b16 %v313
      %v442 = vunpack.c.l.b16 %v314
      %v443 = vunpack.c.l.b16 %v315
      %v444 = vunpack.c.l.b16 %v316
      %v445 = vunpack.c.l.b16 %v317
      %v446 = vunpack.c.l.b16 %v318
      %v447 = vunpack.c.l.b16 %v319
      %v448 = vunpack.c.l.b16 %v320
      %v449 = vunpack.c.l.b16 %v321
      %v450 = vunpack.c.l.b16 %v322
      %v451 = vunpack.c.l.b16 %v323
      %v452 = vunpack.c.l.b16 %v324
      %v453 = vunpack.c.l.b16 %v325
      %v454 = vunpack.c.l.b16 %v326
      %v455 = vunpack.c.l.b16 %v327
      %v456 = vunpack.c.l.b16 %v328
      %v457 = vunpack.c.l.b16 %v329
      %v458 = vunpack.c.l.b16 %v330
      %v459 = vunpack.c.l.b16 %v331
      %v460 = vunpack.c.l.b16 %v332
      %v461 = vunpack.c.l.b16 %v333
      %v462 = vunpack.c.l.b16 %v334
      %v463 = vunpack.c.l.b16 %v335
      %v464 = vunpack.c.l.b16 %v336
      %v465 = vunpack.c.l.b16 %v337
      %v466 = vunpack.c.l.b16 %v338
      %v467 = vunpack.c.l.b16 %v339
      %v468 = vunpack.c.l.b16 %v340
      %v469 = vunpack.c.l.b16 %v341
      %v470 = vunpack.c.l.b16 %v342
      %v471 = vunpack.c.l.b16 %v343
      %v472 = vunpack.c.l.b16 %v344
      %v473 = vunpack.c.l.b16 %v345
      %v474 = vunpack.c.l.b16 %v346
      %v475 = vunpack.c.l.b16 %v347
      %v476 = vunpack.c.l.b16 %v348
      %v477 = vunpack.c.l.b16 %v349
      %v478 = vunpack.c.l.b16 %v350
      %v479 = vunpack.c.l.b16 %v351
      %v480 = vunpack.c.l.b16 %v352
      %v481 = vunpack.c.l.b16 %v353
      %v482 = vunpack.c.l.b16 %v354
      %v483 = vunpack.c.l.b16 %v355
      %v484 = vunpack.c.l.b16 %v356
      %v485 = vunpack.c.l.b16 %v357
      %v486 = vpack.c.b16 %v423, %v422
      %v487 = vpack.c.b16 %v425, %v424
      %v488 = vpack.c.b16 %v427, %v426
      %v489 = vpack.c.b16 %v429, %v428
      %v490 = vpack.c.b16 %v431, %v430
      %v491 = vpack.c.b16 %v433, %v432
      %v492 = vpack.c.b16 %v435, %v434
      %v493 = vpack.c.b16 %v437, %v436
      %v494 = vpack.c.b16 %v439, %v438
      %v495 = vpack.c.b16 %v441, %v440
      %v496 = vpack.c.b16 %v443, %v442
      %v497 = vpack.c.b16 %v445, %v444
      %v498 = vpack.c.b16 %v447, %v446
      %v499 = vpack.c.b16 %v449, %v448
      %v500 = vpack.c.b16 %v451, %v450
      %v501 = vpack.c.b16 %v453, %v452
      %v502 = vpack.c.b16 %v455, %v454
      %v503 = vpack.c.b16 %v457, %v456
      %v504 = vpack.c.b16 %v459, %v458
      %v505 = vpack.c.b16 %v461, %v460
      %v506 = vpack.c.b16 %v463, %v462
      %v507 = vpack.c.b16 %v465, %v464
      %v508 = vpack.c.b16 %v467, %v466
      %v509 = vpack.c.b16 %v469, %v468
      %v510 = vpack.c.b16 %v471, %v470
      %v511 = vpack.c.b16 %v473, %v472
      %v512 = vpack.c.b16 %v475, %v474
      %v513 = vpack.c.b16 %v477, %v476
      %v514 = vpack.c.b16 %v479, %v478
      %v515 = vpack.c.b16 %v481, %v480
      %v516 = vpack.c.b16 %v483, %v482
      %v517 = vpack.c.b16 %v485, %v484
      %550 = vmatprep.subr.bf16.mxu0 0
      %551 = vmatpush1.bf16.msra.mxu0 %v486
      %552 = vmatprep.subr.bf16.mxu0 0
      %553 = vmatpush1.bf16.msra.mxu0 %v487
      %554 = vmatprep.subr.bf16.mxu0 0
      %555 = vmatpush1.bf16.msra.mxu0 %v488
      %556 = vmatprep.subr.bf16.mxu0 0
      %557 = vmatpush1.bf16.msra.mxu0 %v489
      %558 = vmatprep.subr.bf16.mxu0 0
      %559 = vmatpush1.bf16.msra.mxu0 %v490
      %560 = vmatprep.subr.bf16.mxu0 0
      %561 = vmatpush1.bf16.msra.mxu0 %v491
      %562 = vmatprep.subr.bf16.mxu0 0
      %563 = vmatpush1.bf16.msra.mxu0 %v492
      %564 = vmatprep.subr.bf16.mxu0 0
      %565 = vmatpush1.bf16.msra.mxu0 %v493
      %566 = vmatprep.subr.bf16.mxu0 0
      %567 = vmatpush1.bf16.msra.mxu0 %v494
      %568 = vmatprep.subr.bf16.mxu0 0
      %569 = vmatpush1.bf16.msra.mxu0 %v495
      %570 = vmatprep.subr.bf16.mxu0 0
      %571 = vmatpush1.bf16.msra.mxu0 %v496
      %572 = vmatprep.subr.bf16.mxu0 0
      %573 = vmatpush1.bf16.msra.mxu0 %v497
      %574 = vmatprep.subr.bf16.mxu0 0
      %575 = vmatpush1.bf16.msra.mxu0 %v498
      %576 = vmatprep.subr.bf16.mxu0 0
      %577 = vmatpush1.bf16.msra.mxu0 %v499
      %578 = vmatprep.subr.bf16.mxu0 0
      %579 = vmatpush1.bf16.msra.mxu0 %v500
      %580 = vmatprep.subr.bf16.mxu0 0
      %581 = vmatpush1.bf16.msra.mxu0 %v501
      %582 = vmatprep.mubr.bf16.mxu0 %v291
      %583 = vmatmul.mubr.bf16.gmra.mrb[0].mxu0 %v290
      %v584 = vpop.f32.mrb[0].mxu0
      %v585 = vadd.f32 0.0, %v584
      %v586 = vpop.f32.mrb[0].mxu0
      %v587 = vpop.f32.mrb[0].mxu0
      %v588 = vpop.f32.mrb[0].mxu0
      %589 = vdwg.mxu0
      %590 = vmatprep.subr.bf16.mxu0 0
      %591 = vmatpush1.bf16.msra.mxu0 %v502
      %592 = vmatprep.subr.bf16.mxu0 0
      %593 = vmatpush1.bf16.msra.mxu0 %v503
      %594 = vmatprep.subr.bf16.mxu0 0
      %595 = vmatpush1.bf16.msra.mxu0 %v504
      %596 = vmatprep.subr.bf16.mxu0 0
      %597 = vmatpush1.bf16.msra.mxu0 %v505
      %598 = vmatprep.subr.bf16.mxu0 0
      %599 = vmatpush1.bf16.msra.mxu0 %v506
      %600 = vmatprep.subr.bf16.mxu0 0
      %601 = vmatpush1.bf16.msra.mxu0 %v507
      %602 = vmatprep.subr.bf16.mxu0 0
      %603 = vmatpush1.bf16.msra.mxu0 %v508
      %604 = vmatprep.subr.bf16.mxu0 0
      %605 = vmatpush1.bf16.msra.mxu0 %v509
      %606 = vmatprep.subr.bf16.mxu0 0
      %607 = vmatpush1.bf16.msra.mxu0 %v510
      %608 = vmatprep.subr.bf16.mxu0 0
      %609 = vmatpush1.bf16.msra.mxu0 %v511
      %610 = vmatprep.subr.bf16.mxu0 0
      %611 = vmatpush1.bf16.msra.mxu0 %v512
      %612 = vmatprep.subr.bf16.mxu0 0
      %613 = vmatpush1.bf16.msra.mxu0 %v513
      %614 = vmatprep.subr.bf16.mxu0 0
      %615 = vmatpush1.bf16.msra.mxu0 %v514
      %616 = vmatprep.subr.bf16.mxu0 0
      %617 = vmatpush1.bf16.msra.mxu0 %v515
      %618 = vmatprep.subr.bf16.mxu0 0
      %619 = vmatpush1.bf16.msra.mxu0 %v516
      %620 = vmatprep.subr.bf16.mxu0 0
      %621 = vmatpush1.bf16.msra.mxu0 %v517
      %622 = vmatprep.mubr.bf16.mxu0 %v293
      %623 = vmatmul.mubr.bf16.gmra.mrb[0].mxu0 %v292
      %v624 = vpop.f32.mrb[0].mxu0
      %v625 = vadd.f32 %v585, %v624
      %v626 = vpop.f32.mrb[0].mxu0
      %v627 = vpop.f32.mrb[0].mxu0
      %v628 = vpop.f32.mrb[0].mxu0
      %629 = vdwg.mxu0
      %v630 = vmax.f32 %v625, 0.0
      %v631 = vpack.c.bf16 %v630, %v630
      %v632 = vld [vmem:[#allocation9] sm:$0xff]
      %v633 = vld [vmem:[#allocation9 + $0x8] sm:$0xff]
      %v634 = vld [vmem:[#allocation9 + $0x10] sm:$0xff]
      %v635 = vld [vmem:[#allocation9 + $0x18] sm:$0xff]
      %v636 = vld [vmem:[#allocation9 + $0x20] sm:$0xff]
      %v637 = vld [vmem:[#allocation9 + $0x28] sm:$0xff]
      %v638 = vld [vmem:[#allocation9 + $0x30] sm:$0xff]
      %v639 = vld [vmem:[#allocation9 + $0x38] sm:$0xff]
      %v640 = vld [vmem:[#allocation9 + $0x40] sm:$0xff]
      %v641 = vld [vmem:[#allocation9 + $0x48] sm:$0xff]
      %v642 = vld [vmem:[#allocation9 + $0x50] sm:$0xff]
      %v643 = vld [vmem:[#allocation9 + $0x58] sm:$0xff]
      %v644 = vld [vmem:[#allocation9 + $0x60] sm:$0xff]
      %v645 = vld [vmem:[#allocation9 + $0x68] sm:$0xff]
      %v646 = vld [vmem:[#allocation9 + $0x70] sm:$0xff]
      %v647 = vld [vmem:[#allocation9 + $0x78] sm:$0xff]
      %v648 = vld [vmem:[#allocation9 + $0x80] sm:$0xff]
      %v649 = vld [vmem:[#allocation9 + $0x88] sm:$0xff]
      %v650 = vld [vmem:[#allocation9 + $0x90] sm:$0xff]
      %v651 = vld [vmem:[#allocation9 + $0x98] sm:$0xff]
      %v652 = vld [vmem:[#allocation9 + $0xa0] sm:$0xff]
      %v653 = vld [vmem:[#allocation9 + $0xa8] sm:$0xff]
      %v654 = vld [vmem:[#allocation9 + $0xb0] sm:$0xff]
      %v655 = vld [vmem:[#allocation9 + $0xb8] sm:$0xff]
      %v656 = vld [vmem:[#allocation9 + $0xc0] sm:$0xff]
      %v657 = vld [vmem:[#allocation9 + $0xc8] sm:$0xff]
      %v658 = vld [vmem:[#allocation9 + $0xd0] sm:$0xff]
      %v659 = vld [vmem:[#allocation9 + $0xd8] sm:$0xff]
      %v660 = vld [vmem:[#allocation9 + $0xe0] sm:$0xff]
      %v661 = vld [vmem:[#allocation9 + $0xe8] sm:$0xff]
      %v662 = vld [vmem:[#allocation9 + $0xf0] sm:$0xff]
      %v663 = vld [vmem:[#allocation9 + $0xf8] sm:$0xff]
      %v696 = vunpack.c.l.b16 %v632
      %v697 = vunpack.c.h.b16 %v632
      %v698 = vunpack.c.l.b16 %v633
      %v699 = vunpack.c.h.b16 %v633
      %v700 = vunpack.c.l.b16 %v634
      %v701 = vunpack.c.h.b16 %v634
      %v702 = vunpack.c.l.b16 %v635
      %v703 = vunpack.c.h.b16 %v635
      %v704 = vunpack.c.l.b16 %v636
      %v705 = vunpack.c.h.b16 %v636
      %v706 = vunpack.c.l.b16 %v637
      %v707 = vunpack.c.h.b16 %v637
      %v708 = vunpack.c.l.b16 %v638
      %v709 = vunpack.c.h.b16 %v638
      %v710 = vunpack.c.l.b16 %v639
      %v711 = vunpack.c.h.b16 %v639
      %v712 = vunpack.c.l.b16 %v640
      %v713 = vunpack.c.h.b16 %v640
      %v714 = vunpack.c.l.b16 %v641
      %v715 = vunpack.c.h.b16 %v641
      %v716 = vunpack.c.l.b16 %v642
      %v717 = vunpack.c.h.b16 %v642
      %v718 = vunpack.c.l.b16 %v643
      %v719 = vunpack.c.h.b16 %v643
      %v720 = vunpack.c.l.b16 %v644
      %v721 = vunpack.c.h.b16 %v644
      %v722 = vunpack.c.l.b16 %v645
      %v723 = vunpack.c.h.b16 %v645
      %v724 = vunpack.c.l.b16 %v646
      %v725 = vunpack.c.h.b16 %v646
      %v726 = vunpack.c.l.b16 %v647
      %v727 = vunpack.c.h.b16 %v647
      %v728 = vunpack.c.l.b16 %v648
      %v729 = vunpack.c.h.b16 %v648
      %v730 = vunpack.c.l.b16 %v649
      %v731 = vunpack.c.h.b16 %v649
      %v732 = vunpack.c.l.b16 %v650
      %v733 = vunpack.c.h.b16 %v650
      %v734 = vunpack.c.l.b16 %v651
      %v735 = vunpack.c.h.b16 %v651
      %v736 = vunpack.c.l.b16 %v652
      %v737 = vunpack.c.h.b16 %v652
      %v738 = vunpack.c.l.b16 %v653
      %v739 = vunpack.c.h.b16 %v653
      %v740 = vunpack.c.l.b16 %v654
      %v741 = vunpack.c.h.b16 %v654
      %v742 = vunpack.c.l.b16 %v655
      %v743 = vunpack.c.h.b16 %v655
      %v744 = vunpack.c.l.b16 %v656
      %v745 = vunpack.c.h.b16 %v656
      %v746 = vunpack.c.l.b16 %v657
      %v747 = vunpack.c.h.b16 %v657
      %v748 = vunpack.c.l.b16 %v658
      %v749 = vunpack.c.h.b16 %v658
      %v750 = vunpack.c.l.b16 %v659
      %v751 = vunpack.c.h.b16 %v659
      %v752 = vunpack.c.l.b16 %v660
      %v753 = vunpack.c.h.b16 %v660
      %v754 = vunpack.c.l.b16 %v661
      %v755 = vunpack.c.h.b16 %v661
      %v756 = vunpack.c.l.b16 %v662
      %v757 = vunpack.c.h.b16 %v662
      %v758 = vunpack.c.l.b16 %v663
      %v759 = vunpack.c.h.b16 %v663
      %v760 = vpack.c.b16 %v700, %v696
      %v761 = vpack.c.b16 %v701, %v697
      %v762 = vpack.c.b16 %v702, %v698
      %v763 = vpack.c.b16 %v703, %v699
      %v764 = vpack.c.b16 %v708, %v704
      %v765 = vpack.c.b16 %v709, %v705
      %v766 = vpack.c.b16 %v710, %v706
      %v767 = vpack.c.b16 %v711, %v707
      %v768 = vpack.c.b16 %v716, %v712
      %v769 = vpack.c.b16 %v717, %v713
      %v770 = vpack.c.b16 %v718, %v714
      %v771 = vpack.c.b16 %v719, %v715
      %v772 = vpack.c.b16 %v724, %v720
      %v773 = vpack.c.b16 %v725, %v721
      %v774 = vpack.c.b16 %v726, %v722
      %v775 = vpack.c.b16 %v727, %v723
      %v776 = vpack.c.b16 %v732, %v728
      %v777 = vpack.c.b16 %v733, %v729
      %v778 = vpack.c.b16 %v734, %v730
      %v779 = vpack.c.b16 %v735, %v731
      %v780 = vpack.c.b16 %v740, %v736
      %v781 = vpack.c.b16 %v741, %v737
      %v782 = vpack.c.b16 %v742, %v738
      %v783 = vpack.c.b16 %v743, %v739
      %v784 = vpack.c.b16 %v748, %v744
      %v785 = vpack.c.b16 %v749, %v745
      %v786 = vpack.c.b16 %v750, %v746
      %v787 = vpack.c.b16 %v751, %v747
      %v788 = vpack.c.b16 %v756, %v752
      %v789 = vpack.c.b16 %v757, %v753
      %v790 = vpack.c.b16 %v758, %v754
      %v791 = vpack.c.b16 %v759, %v755
      %824 = vmatprep.subr.bf16.mxu0 %v761
      %825 = vmatpush1.bf16.msra.mxu0 %v760
      %826 = vmatprep.subr.bf16.mxu0 %v765
      %827 = vmatpush1.bf16.msra.mxu0 %v764
      %828 = vmatprep.subr.bf16.mxu0 %v769
      %829 = vmatpush1.bf16.msra.mxu0 %v768
      %830 = vmatprep.subr.bf16.mxu0 %v773
      %831 = vmatpush1.bf16.msra.mxu0 %v772
      %832 = vmatprep.subr.bf16.mxu0 %v777
      %833 = vmatpush1.bf16.msra.mxu0 %v776
      %834 = vmatprep.subr.bf16.mxu0 %v781
      %835 = vmatpush1.bf16.msra.mxu0 %v780
      %836 = vmatprep.subr.bf16.mxu0 %v785
      %837 = vmatpush1.bf16.msra.mxu0 %v784
      %838 = vmatprep.subr.bf16.mxu0 %v789
      %839 = vmatpush1.bf16.msra.mxu0 %v788
      %840 = vmatprep.subr.bf16.mxu0 0
      %841 = vmatpush1.bf16.msra.mxu0 0
      %842 = vmatprep.subr.bf16.mxu0 0
      %843 = vmatpush1.bf16.msra.mxu0 0
      %844 = vmatprep.subr.bf16.mxu0 0
      %845 = vmatpush1.bf16.msra.mxu0 0
      %846 = vmatprep.subr.bf16.mxu0 0
      %847 = vmatpush1.bf16.msra.mxu0 0
      %848 = vmatprep.subr.bf16.mxu0 0
      %849 = vmatpush1.bf16.msra.mxu0 0
      %850 = vmatprep.subr.bf16.mxu0 0
      %851 = vmatpush1.bf16.msra.mxu0 0
      %852 = vmatprep.subr.bf16.mxu0 0
      %853 = vmatpush1.bf16.msra.mxu0 0
      %854 = vmatprep.subr.bf16.mxu0 0
      %855 = vmatpush1.bf16.msra.mxu0 0
      %856 = vmatprep.mubr.bf16.mxu0 0
      %857 = vmatmul.mubr.bf16.gmra.mrb[0].mxu0 %v631
      %v858 = vpop.f32.mrb[0].mxu0
      %v859 = vadd.f32 0.0, %v858
      %v860 = vpop.f32.mrb[0].mxu0
      %v861 = vadd.f32 0.0, %v860
      %v862 = vpop.f32.mrb[0].mxu0
      %v863 = vpop.f32.mrb[0].mxu0
      %864 = vdwg.mxu0
      %865 = vmatprep.subr.bf16.mxu0 %v763
      %866 = vmatpush1.bf16.msra.mxu0 %v762
      %867 = vmatprep.subr.bf16.mxu0 %v767
      %868 = vmatpush1.bf16.msra.mxu0 %v766
      %869 = vmatprep.subr.bf16.mxu0 %v771
      %870 = vmatpush1.bf16.msra.mxu0 %v770
      %871 = vmatprep.subr.bf16.mxu0 %v775
      %872 = vmatpush1.bf16.msra.mxu0 %v774
      %873 = vmatprep.subr.bf16.mxu0 %v779
      %874 = vmatpush1.bf16.msra.mxu0 %v778
      %875 = vmatprep.subr.bf16.mxu0 %v783
      %876 = vmatpush1.bf16.msra.mxu0 %v782
      %877 = vmatprep.subr.bf16.mxu0 %v787
      %878 = vmatpush1.bf16.msra.mxu0 %v786
      %879 = vmatprep.subr.bf16.mxu0 %v791
      %880 = vmatpush1.bf16.msra.mxu0 %v790
      %881 = vmatprep.subr.bf16.mxu0 0
      %882 = vmatpush1.bf16.msra.mxu0 0
      %883 = vmatprep.subr.bf16.mxu0 0
      %884 = vmatpush1.bf16.msra.mxu0 0
      %885 = vmatprep.subr.bf16.mxu0 0
      %886 = vmatpush1.bf16.msra.mxu0 0
      %887 = vmatprep.subr.bf16.mxu0 0
      %888 = vmatpush1.bf16.msra.mxu0 0
      %889 = vmatprep.subr.bf16.mxu0 0
      %890 = vmatpush1.bf16.msra.mxu0 0
      %891 = vmatprep.subr.bf16.mxu0 0
      %892 = vmatpush1.bf16.msra.mxu0 0
      %893 = vmatprep.subr.bf16.mxu0 0
      %894 = vmatpush1.bf16.msra.mxu0 0
      %895 = vmatprep.subr.bf16.mxu0 0
      %896 = vmatpush1.bf16.msra.mxu0 0
      %897 = vmatprep.mubr.bf16.mxu0 0
      %898 = vmatmul.mubr.bf16.gmra.mrb[0].mxu0 %v631
      %v899 = vpop.f32.mrb[0].mxu0
      %v900 = vadd.f32 0.0, %v899
      %v901 = vpop.f32.mrb[0].mxu0
      %v902 = vadd.f32 0.0, %v901
      %v903 = vpop.f32.mrb[0].mxu0
      %v904 = vpop.f32.mrb[0].mxu0
      %905 = vdwg.mxu0
      %v906 = vmax.f32 %v859, 0.0
      %v907 = vmax.f32 %v861, 0.0
      %v908 = vmax.f32 %v900, 0.0
      %v909 = vmax.f32 %v902, 0.0
      %v910 = vmul.f32 %v286, 0.8
      %v911 = vmul.f32 %v287, 0.8
      %v912 = vmul.f32 %v288, 0.8
      %v913 = vmul.f32 %v289, 0.8
      %v914 = vmul.f32 %v906, 0.2
      %v915 = vmul.f32 %v907, 0.2
      %v916 = vmul.f32 %v908, 0.2
      %v917 = vmul.f32 %v909, 0.2
      %v918 = vadd.f32 %v910, %v914
      %v919 = vadd.f32 %v911, %v915
      %v920 = vadd.f32 %v912, %v916
      %v921 = vadd.f32 %v913, %v917
      %v922 = vmul.f32 %v918, %v918
      %v923 = vmul.f32 %v919, %v919
      %v924 = vmul.f32 %v920, %v920
      %v925 = vmul.f32 %v921, %v921
      %v926 = vadd.f32 %v922, %v923
      %v927 = vadd.f32 %v926, %v924
      %v928 = vadd.f32 %v927, %v925
      %929 = vadd.xlane.f32.xlu0 %v928
      %v930 = vpop.xlane.xlu0 %929
      %v931 = vadd.f32 %v930, 1e-30
      %v932 = vrsqrt.pop %v931
      %v933 = vmul.f32 %v932, 100.0
      %v934 = vmul.f32 %v918, %v933
      %v935 = vmul.f32 %v919, %v933
      %v936 = vmul.f32 %v920, %v933
      %v937 = vmul.f32 %v921, %v933
      %v938 = vpack.c.bf16 %v934, %v934
      %v939 = vpack.c.bf16 %v935, %v935
      %v940 = vpack.c.bf16 %v936, %v936
      %v941 = vpack.c.bf16 %v937, %v937
      %v946 = vunpack.c.l.b16 %v938
      %v947 = vunpack.c.l.b16 %v939
      %v948 = vunpack.c.l.b16 %v940
      %v949 = vunpack.c.l.b16 %v941
      %v950 = vpack.c.b16 %v947, %v946
      %v951 = vpack.c.b16 %v949, %v948
      %954 = vst [vmem:[#allocation2] sm:$0xff] %v950
      %955 = vst [vmem:[#allocation2 + $0x8] sm:$0xff] %v951
    $region49: #{tpu_custom_call.1} parent=1 // pred_fallthru
      _
    %v956 = vld [vmem:[#allocation2] sm:$0xff]
    %v957 = vld [vmem:[#allocation2 + $0x8] sm:$0xff]
    %v958 = vld [vmem:[#allocation11] sm:$0xf]
    %v959 = vld [vmem:[#allocation11 + $0x4] sm:$0xf]
    %v960 = vld [vmem:[#allocation11 + $0x8] sm:$0xf]
    %v961 = vld [vmem:[#allocation11 + $0xc] sm:$0xf]
    %v962 = vld [vmem:[#allocation11 + $0x10] sm:$0xf]
    %v963 = vld [vmem:[#allocation11 + $0x14] sm:$0xf]
    %v964 = vld [vmem:[#allocation11 + $0x18] sm:$0xf]
    %v965 = vld [vmem:[#allocation11 + $0x1c] sm:$0xf]
    %v966 = vld [vmem:[#allocation11 + $0x20] sm:$0xf]
    %v967 = vld [vmem:[#allocation11 + $0x24] sm:$0xf]
    %v968 = vld [vmem:[#allocation11 + $0x28] sm:$0xf]
    %v969 = vld [vmem:[#allocation11 + $0x2c] sm:$0xf]
    %v970 = vld [vmem:[#allocation11 + $0x30] sm:$0xf]
    %v971 = vld [vmem:[#allocation11 + $0x34] sm:$0xf]
    %v972 = vld [vmem:[#allocation11 + $0x38] sm:$0xf]
    %v973 = vld [vmem:[#allocation11 + $0x3c] sm:$0xf]
    %v974 = vld [vmem:[#allocation11 + $0x40] sm:$0xf]
    %v975 = vld [vmem:[#allocation11 + $0x44] sm:$0xf]
    %v976 = vld [vmem:[#allocation11 + $0x48] sm:$0xf]
    %v977 = vld [vmem:[#allocation11 + $0x4c] sm:$0xf]
    %v978 = vld [vmem:[#allocation11 + $0x50] sm:$0xf]
    %v979 = vld [vmem:[#allocation11 + $0x54] sm:$0xf]
    %v980 = vld [vmem:[#allocation11 + $0x58] sm:$0xf]
    %v981 = vld [vmem:[#allocation11 + $0x5c] sm:$0xf]
    %v982 = vld [vmem:[#allocation11 + $0x60] sm:$0xf]
    %v983 = vld [vmem:[#allocation11 + $0x64] sm:$0xf]
    %v984 = vld [vmem:[#allocation11 + $0x68] sm:$0xf]
    %v985 = vld [vmem:[#allocation11 + $0x6c] sm:$0xf]
    %v986 = vld [vmem:[#allocation11 + $0x70] sm:$0xf]
    %v987 = vld [vmem:[#allocation11 + $0x74] sm:$0xf]
    %v988 = vld [vmem:[#allocation11 + $0x78] sm:$0xf]
    %v989 = vld [vmem:[#allocation11 + $0x7c] sm:$0xf]
    %v990 = vld [vmem:[#allocation11 + $0x80] sm:$0xf]
    %v991 = vld [vmem:[#allocation11 + $0x84] sm:$0xf]
    %v992 = vld [vmem:[#allocation11 + $0x88] sm:$0xf]
    %v993 = vld [vmem:[#allocation11 + $0x8c] sm:$0xf]
    %v994 = vld [vmem:[#allocation11 + $0x90] sm:$0xf]
    %v995 = vld [vmem:[#allocation11 + $0x94] sm:$0xf]
    %v996 = vld [vmem:[#allocation11 + $0x98] sm:$0xf]
    %v997 = vld [vmem:[#allocation11 + $0x9c] sm:$0xf]
    %v998 = vld [vmem:[#allocation11 + $0xa0] sm:$0xf]
    %v999 = vld [vmem:[#allocation11 + $0xa4] sm:$0xf]
    %v1000 = vld [vmem:[#allocation11 + $0xa8] sm:$0xf]
    %v1001 = vld [vmem:[#allocation11 + $0xac] sm:$0xf]
    %v1002 = vld [vmem:[#allocation11 + $0xb0] sm:$0xf]
    %v1003 = vld [vmem:[#allocation11 + $0xb4] sm:$0xf]
    %v1004 = vld [vmem:[#allocation11 + $0xb8] sm:$0xf]
    %v1005 = vld [vmem:[#allocation11 + $0xbc] sm:$0xf]
    %v1006 = vld [vmem:[#allocation11 + $0xc0] sm:$0xf]
    %v1007 = vld [vmem:[#allocation11 + $0xc4] sm:$0xf]
    %v1008 = vld [vmem:[#allocation11 + $0xc8] sm:$0xf]
    %v1009 = vld [vmem:[#allocation11 + $0xcc] sm:$0xf]
    %v1010 = vld [vmem:[#allocation11 + $0xd0] sm:$0xf]
    %v1011 = vld [vmem:[#allocation11 + $0xd4] sm:$0xf]
    %v1012 = vld [vmem:[#allocation11 + $0xd8] sm:$0xf]
    %v1013 = vld [vmem:[#allocation11 + $0xdc] sm:$0xf]
    %v1014 = vld [vmem:[#allocation11 + $0xe0] sm:$0xf]
    %v1015 = vld [vmem:[#allocation11 + $0xe4] sm:$0xf]
    %v1016 = vld [vmem:[#allocation11 + $0xe8] sm:$0xf]
    %v1017 = vld [vmem:[#allocation11 + $0xec] sm:$0xf]
    %v1018 = vld [vmem:[#allocation11 + $0xf0] sm:$0xf]
    %v1019 = vld [vmem:[#allocation11 + $0xf4] sm:$0xf]
    %v1020 = vld [vmem:[#allocation11 + $0xf8] sm:$0xf]
    %v1021 = vld [vmem:[#allocation11 + $0xfc] sm:$0xf]
    %v1024 = vunpack.c.l.b16 %v956
    %v1025 = vunpack.c.h.b16 %v956
    %v1026 = vunpack.c.l.b16 %v957
    %v1027 = vunpack.c.h.b16 %v957
    %v1028 = vpack.c.b16 %v1024, %v1024
    %v1029 = vpack.c.b16 %v1025, %v1025
    %v1030 = vpack.c.b16 %v1026, %v1026
    %v1031 = vpack.c.b16 %v1027, %v1027
    %v1100 = vunpack.c.l.b16 %v958
    %v1101 = vunpack.c.l.b16 %v959
    %v1102 = vunpack.c.l.b16 %v960
    %v1103 = vunpack.c.l.b16 %v961
    %v1104 = vunpack.c.l.b16 %v962
    %v1105 = vunpack.c.l.b16 %v963
    %v1106 = vunpack.c.l.b16 %v964
    %v1107 = vunpack.c.l.b16 %v965
    %v1108 = vunpack.c.l.b16 %v966
    %v1109 = vunpack.c.l.b16 %v967
    %v1110 = vunpack.c.l.b16 %v968
    %v1111 = vunpack.c.l.b16 %v969
    %v1112 = vunpack.c.l.b16 %v970
    %v1113 = vunpack.c.l.b16 %v971
    %v1114 = vunpack.c.l.b16 %v972
    %v1115 = vunpack.c.l.b16 %v973
    %v1116 = vunpack.c.l.b16 %v974
    %v1117 = vunpack.c.l.b16 %v975
    %v1118 = vunpack.c.l.b16 %v976
    %v1119 = vunpack.c.l.b16 %v977
    %v1120 = vunpack.c.l.b16 %v978
    %v1121 = vunpack.c.l.b16 %v979
    %v1122 = vunpack.c.l.b16 %v980
    %v1123 = vunpack.c.l.b16 %v981
    %v1124 = vunpack.c.l.b16 %v982
    %v1125 = vunpack.c.l.b16 %v983
    %v1126 = vunpack.c.l.b16 %v984
    %v1127 = vunpack.c.l.b16 %v985
    %v1128 = vunpack.c.l.b16 %v986
    %v1129 = vunpack.c.l.b16 %v987
    %v1130 = vunpack.c.l.b16 %v988
    %v1131 = vunpack.c.l.b16 %v989
    %v1132 = vunpack.c.l.b16 %v990
    %v1133 = vunpack.c.l.b16 %v991
    %v1134 = vunpack.c.l.b16 %v992
    %v1135 = vunpack.c.l.b16 %v993
    %v1136 = vunpack.c.l.b16 %v994
    %v1137 = vunpack.c.l.b16 %v995
    %v1138 = vunpack.c.l.b16 %v996
    %v1139 = vunpack.c.l.b16 %v997
    %v1140 = vunpack.c.l.b16 %v998
    %v1141 = vunpack.c.l.b16 %v999
    %v1142 = vunpack.c.l.b16 %v1000
    %v1143 = vunpack.c.l.b16 %v1001
    %v1144 = vunpack.c.l.b16 %v1002
    %v1145 = vunpack.c.l.b16 %v1003
    %v1146 = vunpack.c.l.b16 %v1004
    %v1147 = vunpack.c.l.b16 %v1005
    %v1148 = vunpack.c.l.b16 %v1006
    %v1149 = vunpack.c.l.b16 %v1007
    %v1150 = vunpack.c.l.b16 %v1008
    %v1151 = vunpack.c.l.b16 %v1009
    %v1152 = vunpack.c.l.b16 %v1010
    %v1153 = vunpack.c.l.b16 %v1011
    %v1154 = vunpack.c.l.b16 %v1012
    %v1155 = vunpack.c.l.b16 %v1013
    %v1156 = vunpack.c.l.b16 %v1014
    %v1157 = vunpack.c.l.b16 %v1015
    %v1158 = vunpack.c.l.b16 %v1016
    %v1159 = vunpack.c.l.b16 %v1017
    %v1160 = vunpack.c.l.b16 %v1018
    %v1161 = vunpack.c.l.b16 %v1019
    %v1162 = vunpack.c.l.b16 %v1020
    %v1163 = vunpack.c.l.b16 %v1021
    %v1164 = vpack.c.b16 %v1101, %v1100
    %v1165 = vpack.c.b16 %v1103, %v1102
    %v1166 = vpack.c.b16 %v1105, %v1104
    %v1167 = vpack.c.b16 %v1107, %v1106
    %v1168 = vpack.c.b16 %v1109, %v1108
    %v1169 = vpack.c.b16 %v1111, %v1110
    %v1170 = vpack.c.b16 %v1113, %v1112
    %v1171 = vpack.c.b16 %v1115, %v1114
    %v1172 = vpack.c.b16 %v1117, %v1116
    %v1173 = vpack.c.b16 %v1119, %v1118
    %v1174 = vpack.c.b16 %v1121, %v1120
    %v1175 = vpack.c.b16 %v1123, %v1122
    %v1176 = vpack.c.b16 %v1125, %v1124
    %v1177 = vpack.c.b16 %v1127, %v1126
    %v1178 = vpack.c.b16 %v1129, %v1128
    %v1179 = vpack.c.b16 %v1131, %v1130
    %v1180 = vpack.c.b16 %v1133, %v1132
    %v1181 = vpack.c.b16 %v1135, %v1134
    %v1182 = vpack.c.b16 %v1137, %v1136
    %v1183 = vpack.c.b16 %v1139, %v1138
    %v1184 = vpack.c.b16 %v1141, %v1140
    %v1185 = vpack.c.b16 %v1143, %v1142
    %v1186 = vpack.c.b16 %v1145, %v1144
    %v1187 = vpack.c.b16 %v1147, %v1146
    %v1188 = vpack.c.b16 %v1149, %v1148
    %v1189 = vpack.c.b16 %v1151, %v1150
    %v1190 = vpack.c.b16 %v1153, %v1152
    %v1191 = vpack.c.b16 %v1155, %v1154
    %v1192 = vpack.c.b16 %v1157, %v1156
    %v1193 = vpack.c.b16 %v1159, %v1158
    %v1194 = vpack.c.b16 %v1161, %v1160
    %v1195 = vpack.c.b16 %v1163, %v1162
    %1228 = vmatprep.subr.bf16.mxu0 0
    %1229 = vmatpush1.bf16.msra.mxu0 %v1164
    %1230 = vmatprep.subr.bf16.mxu0 0
    %1231 = vmatpush1.bf16.msra.mxu0 %v1165
    %1232 = vmatprep.subr.bf16.mxu0 0
    %1233 = vmatpush1.bf16.msra.mxu0 %v1166
    %1234 = vmatprep.subr.bf16.mxu0 0
    %1235 = vmatpush1.bf16.msra.mxu0 %v1167
    %1236 = vmatprep.subr.bf16.mxu0 0
    %1237 = vmatpush1.bf16.msra.mxu0 %v1168
    %1238 = vmatprep.subr.bf16.mxu0 0
    %1239 = vmatpush1.bf16.msra.mxu0 %v1169
    %1240 = vmatprep.subr.bf16.mxu0 0
    %1241 = vmatpush1.bf16.msra.mxu0 %v1170
    %1242 = vmatprep.subr.bf16.mxu0 0
    %1243 = vmatpush1.bf16.msra.mxu0 %v1171
    %1244 = vmatprep.subr.bf16.mxu0 0
    %1245 = vmatpush1.bf16.msra.mxu0 %v1172
    %1246 = vmatprep.subr.bf16.mxu0 0
    %1247 = vmatpush1.bf16.msra.mxu0 %v1173
    %1248 = vmatprep.subr.bf16.mxu0 0
    %1249 = vmatpush1.bf16.msra.mxu0 %v1174
    %1250 = vmatprep.subr.bf16.mxu0 0
    %1251 = vmatpush1.bf16.msra.mxu0 %v1175
    %1252 = vmatprep.subr.bf16.mxu0 0
    %1253 = vmatpush1.bf16.msra.mxu0 %v1176
    %1254 = vmatprep.subr.bf16.mxu0 0
    %1255 = vmatpush1.bf16.msra.mxu0 %v1177
    %1256 = vmatprep.subr.bf16.mxu0 0
    %1257 = vmatpush1.bf16.msra.mxu0 %v1178
    %1258 = vmatprep.subr.bf16.mxu0 0
    %1259 = vmatpush1.bf16.msra.mxu0 %v1179
    %1260 = vmatprep.mubr.bf16.mxu0 %v1029
    %1261 = vmatmul.mubr.bf16.gmra.mrb[0].mxu0 %v1028
    %v1262 = vpop.f32.mrb[0].mxu0
    %v1263 = vadd.f32 0.0, %v1262
    %v1264 = vpop.f32.mrb[0].mxu0
    %v1265 = vpop.f32.mrb[0].mxu0
    %v1266 = vpop.f32.mrb[0].mxu0
    %1267 = vdwg.mxu0
    %1268 = vmatprep.subr.bf16.mxu0 0
    %1269 = vmatpush1.bf16.msra.mxu0 %v1180
    %1270 = vmatprep.subr.bf16.mxu0 0
    %1271 = vmatpush1.bf16.msra.mxu0 %v1181
    %1272 = vmatprep.subr.bf16.mxu0 0
    %1273 = vmatpush1.bf16.msra.mxu0 %v1182
    %1274 = vmatprep.subr.bf16.mxu0 0
    %1275 = vmatpush1.bf16.msra.mxu0 %v1183
    %1276 = vmatprep.subr.bf16.mxu0 0
    %1277 = vmatpush1.bf16.msra.mxu0 %v1184
    %1278 = vmatprep.subr.bf16.mxu0 0
    %1279 = vmatpush1.bf16.msra.mxu0 %v1185
    %1280 = vmatprep.subr.bf16.mxu0 0
    %1281 = vmatpush1.bf16.msra.mxu0 %v1186
    %1282 = vmatprep.subr.bf16.mxu0 0
    %1283 = vmatpush1.bf16.msra.mxu0 %v1187
    %1284 = vmatprep.subr.bf16.mxu0 0
    %1285 = vmatpush1.bf16.msra.mxu0 %v1188
    %1286 = vmatprep.subr.bf16.mxu0 0
    %1287 = vmatpush1.bf16.msra.mxu0 %v1189
    %1288 = vmatprep.subr.bf16.mxu0 0
    %1289 = vmatpush1.bf16.msra.mxu0 %v1190
    %1290 = vmatprep.subr.bf16.mxu0 0
    %1291 = vmatpush1.bf16.msra.mxu0 %v1191
    %1292 = vmatprep.subr.bf16.mxu0 0
    %1293 = vmatpush1.bf16.msra.mxu0 %v1192
    %1294 = vmatprep.subr.bf16.mxu0 0
    %1295 = vmatpush1.bf16.msra.mxu0 %v1193
    %1296 = vmatprep.subr.bf16.mxu0 0
    %1297 = vmatpush1.bf16.msra.mxu0 %v1194
    %1298 = vmatprep.subr.bf16.mxu0 0
    %1299 = vmatpush1.bf16.msra.mxu0 %v1195
    %1300 = vmatprep.mubr.bf16.mxu0 %v1031
    %1301 = vmatmul.mubr.bf16.gmra.mrb[0].mxu0 %v1030
    %v1302 = vpop.f32.mrb[0].mxu0
    %v1303 = vadd.f32 %v1263, %v1302
    %v1304 = vpop.f32.mrb[0].mxu0
    %v1305 = vpop.f32.mrb[0].mxu0
    %v1306 = vpop.f32.mrb[0].mxu0
    %1307 = vdwg.mxu0
    %1308 = vst [vmem:[#allocation12] sm:$0xff] %v1303
    // Predicated region
    $region50: #{tpu_custom_call.1} parent=1 // pred_check
      _
    $region51: #{tpu_custom_call.1} parent=1 // pred_check_branch
      %1310 = sbr.rel (0) target = $region53
    $region52: #{tpu_custom_call.1} parent=1 // pred_region
      %s1312 = ssub.s32 128, 128
      %1313 = vsyncadd [#allocation5], %s1312
      %s1315 = sshll.u32 [#allocation12], 4
      %s1316 = int_to_ptr.vmem [resolvable:$true] %s1315
      %1318 = dma.vmem_to_hbm [thread:$0]  %s1316, 128, %s6, [#allocation5]
    $region53: #{tpu_custom_call.1} parent=1 // pred_fallthru
      _
    // Predicated region
    $region54: #{tpu_custom_call.1} parent=1 // pred_check
      _
    $region55: #{tpu_custom_call.1} parent=1 // pred_check_branch
      %1320 = sbr.rel (0) target = $region57
    $region56: #{tpu_custom_call.1} parent=1 // pred_region
      %1321 = dma.done [#allocation5], 128
    $region57: #{tpu_custom_call.1} parent=1 // pred_fallthru
      _
    %1322 = vsyncpa [#allocation4], 1
    %1323 = vsyncpa [#allocation7], 1
    %1324 = vsyncpa [#allocation10], 1
    %1325 = vsyncpa [#allocation5], 1

</llo_original>
